<compile_context>
chip_gen: v5e
topology: v5e:2x2
jax: 0.10.0
libtpu: 0.0.40
codegen_flags: <defaults>
</compile_context>

<pallas_src>
import functools

import jax
import jax.numpy as jnp
from jax.experimental import pallas as pl
from jax.experimental.pallas import tpu as pltpu

_LANE = 128      # vreg lane width
_SUBLANE = 8     # vreg sublane count (f32)


def _round_up(n, m):
    return ((n + m - 1) // m) * m


def _device_kind():
    try:
        return jax.devices()[0].device_kind.lower()
    except Exception:  # pragma: no cover - defensive, keeps CPU/interpret alive
        return ""


_KIND = _device_kind()
# v6e / v7x have bf16 VPU+EUP and the 2x256^2 MXU; v7x has 2 TensorCores/chip.
_IS_V6_PLUS = any(v in _KIND for v in ("v6", "v7"))
_TWO_TC = "v7" in _KIND
_TANH_DTYPE = jnp.bfloat16 if _IS_V6_PLUS else jnp.float32


def _fcdp_kernel(x_ref,
                 w1_ref, b1_ref,
                 w2_ref, b2_ref,
                 w3_ref, b3_ref,
                 w4_ref, b4_ref,
                 scale_ref, shift_ref,
                 out_ref, *, act_dtype):
    """One batch tile: 4 bf16 MXU matmuls (f32 acc) + tanh, then one rescale FMA."""

    def layer(h, w_ref, b_ref):
        z = jnp.dot(h.astype(jnp.bfloat16), w_ref[...],
                    preferred_element_type=jnp.float32) + b_ref[...]
        return jnp.tanh(z.astype(act_dtype))

    h = layer(x_ref[...], w1_ref, b1_ref)
    h = layer(h, w2_ref, b2_ref)
    h = layer(h, w3_ref, b3_ref)
    y = layer(h, w4_ref, b4_ref)
    # rescale_fn with nn_min/nn_max = -1/+1 folded into precomputed scale/shift.
    out_ref[...] = y.astype(jnp.float32) * scale_ref[...] + shift_ref[...]


def prepare_fcdp_params(params, env_min, env_max):
    """One-time (outside the hot path) padding + bf16 cast of weights/biases.

    Zero-padding is exact: padded hidden units see zero weights + zero bias, so
    tanh(0) = 0 and they contribute nothing downstream; padded output lanes get
    scale = shift = 0 and are sliced away after the kernel.  The first layer's
    K dim is left at input_dim so x needs no feature padding.
    Returns (padded_params_bf16, scale_f32, shift_f32) with biases as (1, out_pad).
    """
    padded = []
    for idx, (w, b) in enumerate(params):
        fi, fo = w.shape
        fi_p = fi if idx == 0 else _round_up(fi, _LANE)
        fo_p = _round_up(fo, _LANE)
        w_p = jnp.zeros((fi_p, fo_p), jnp.bfloat16).at[:fi, :fo].set(
            w.astype(jnp.bfloat16))
        b_p = jnp.zeros((1, fo_p), jnp.bfloat16).at[:, :fo].set(
            b.reshape(1, -1).astype(jnp.bfloat16))
        padded.append((w_p, b_p))

    action_dim = env_min.shape[0]
    a_p = _round_up(action_dim, _LANE)
    scale = jnp.zeros((1, a_p), jnp.float32).at[:, :action_dim].set(
        (env_max - env_min) * 0.5)
    shift = jnp.zeros((1, a_p), jnp.float32).at[:, :action_dim].set(
        (env_max + env_min) * 0.5)
    return tuple(padded), scale, shift


@functools.partial(jax.jit, static_argnames=("action_dim",))
def fcdp_forward(x, padded_params, scale, shift, *, action_dim):
    """x: (B, input_dim) f32. padded_params from prepare_fcdp_params."""
    (w1, b1), (w2, b2), (w3, b3), (w4, b4) = padded_params
    x = x.astype(jnp.float32)
    batch, in_dim = x.shape
    assert w1.shape[0] == in_dim, "params were prepared for a different input_dim"
    n_pad = w4.shape[1]

    # ---- batch tiling: balanced tiles (tail waste <= SUBLANE-1 rows), target
    # ~512 rows on v6e/v7x / 256 on older chips, and >=2 grid steps on v7x so
    # both TensorCores are used.
    b8 = _round_up(max(batch, _SUBLANE), _SUBLANE)
    target_tile = 512 if _IS_V6_PLUS else 256
    min_tiles = 2 if (_TWO_TC and b8 >= 2 * _SUBLANE) else 1
    num_tiles = max(pl.cdiv(b8, target_tile), min_tiles)
    tile_b = _round_up(pl.cdiv(b8, num_tiles), _SUBLANE)
    b_pad = tile_b * num_tiles

    # Pad batch rows only if actually needed (no K padding of x at all).
    if b_pad != batch:
        x_p = jnp.zeros((b_pad, in_dim), jnp.float32).at[:batch, :].set(x)
    else:
        x_p = x

    # ---- VMEM budget for the fully-resident strategy (weights single-buffered
    # bf16; x/out double-buffered f32; generous activation + Mosaic scratch).
    h1p, h2p, h3p = w1.shape[1], w2.shape[1], w3.shape[1]
    weight_bytes = 2 * sum(int(w.size) + int(b.size) for w, b in padded_params)
    io_bytes = 4 * 2 * tile_b * (in_dim + n_pad)
    act_bytes = 6 * tile_b * (h1p + h2p + h3p + n_pad)   # f32 z + bf16 h per layer
    misc_bytes = 4 * (int(scale.size) + int(shift.size)) + (1 << 20)
    vmem_needed = weight_bytes + io_bytes + act_bytes + misc_bytes
    assert vmem_needed < 40 * 1024 * 1024, (
        "FCDP layers too wide for the fully-VMEM-resident kernel")
    # TODO(synk): K-tile the wide layers with a pl.when-gated f32 accumulator
    # once the assert above fires (very large input_dim).
    vmem_limit = int(min(max(2 * vmem_needed, 24 * 1024 * 1024),
                         48 * 1024 * 1024))

    # ---- cost estimate (padded shapes) so XLA schedules around the call.
    flops = 2 * b_pad * sum(int(w.shape[0]) * int(w.shape[1])
                            for w, _ in padded_params)
    transcendentals = b_pad * sum(int(w.shape[1]) for w, _ in padded_params)
    bytes_accessed = (4 * b_pad * in_dim + weight_bytes
                      + 4 * (int(scale.size) + int(shift.size))
                      + 4 * b_pad * n_pad)

    # Constant-index-map operands stay VMEM-resident; single-buffer them so
    # the pipeliner does not allocate a useless second copy.
    def resident(arr):
        return pl.BlockSpec(tuple(arr.shape), lambda i: (0, 0),
                            pipeline_mode=pl.Buffered(1))

    out = pl.pallas_call(
        functools.partial(_fcdp_kernel, act_dtype=_TANH_DTYPE),
        out_shape=jax.ShapeDtypeStruct((b_pad, n_pad), jnp.float32),
        grid=(num_tiles,),
        in_specs=[
            pl.BlockSpec((tile_b, in_dim), lambda i: (i, 0)),   # x: batch-tiled
            resident(w1), resident(b1),
            resident(w2), resident(b2),
            resident(w3), resident(b3),
            resident(w4), resident(b4),
            resident(scale), resident(shift),
        ],
        out_specs=pl.BlockSpec((tile_b, n_pad), lambda i: (i, 0)),  # lane-dense
        compiler_params=pltpu.CompilerParams(
            dimension_semantics=("parallel",),        # shards grid over TCs on v7x
            vmem_limit_bytes=vmem_limit),
        cost_estimate=pl.CostEstimate(flops=flops,
                                      transcendentals=transcendentals,
                                      bytes_accessed=bytes_accessed),
    )(x_p, w1, b1, w2, b2, w3, b3, w4, b4, scale, shift)

    return out[:batch, :action_dim]


def init_fcdp_params(key, input_dim, action_dim):
    """Deterministic init mimicking nn.Linear default U(-1/sqrt(fan_in), +)."""
    hidden_dims = (input_dim * 2, input_dim * 4, input_dim * 8)
    dims = [input_dim, hidden_dims[0], hidden_dims[1], hidden_dims[2], action_dim]
    params = []
    for i in range(4):
        fan_in, fan_out = dims[i], dims[i + 1]
        key, kw, kb = jax.random.split(key, 3)
        bound = 1.0 / jnp.sqrt(jnp.float32(fan_in))
        # Stored transposed (in, out) so the kernel does x @ W.
        w_t = jax.random.uniform(kw, (fan_in, fan_out), jnp.float32, -bound, bound)
        b = jax.random.uniform(kb, (fan_out,), jnp.float32, -bound, bound)
        params.append((w_t, b))
    return params


def _reference_forward(x, params, env_min, env_max):
    """Pure-JAX f32 reference of the PyTorch forward for a correctness check."""
    h = x
    for (w, b) in params:
        h = jnp.tanh(h @ w + b)      # out_activation_fc is also tanh
    nn_min, nn_max = -1.0, 1.0
    return (h - nn_min) * (env_max - env_min) / (nn_max - nn_min) + env_min


if __name__ == "__main__":
    key = jax.random.PRNGKey(0)

    batch = 8
    input_dim = 32            # -> hidden dims (64, 128, 256)
    action_dim = 4
    env_min = jnp.array([-2.0, -1.0, -0.5, -3.0], dtype=jnp.float32)
    env_max = jnp.array([2.0, 1.0, 0.5, 3.0], dtype=jnp.float32)

    key, kx, kp = jax.random.split(key, 3)
    x = jax.random.normal(kx, (batch, input_dim), dtype=jnp.float32)
    params = init_fcdp_params(kp, input_dim, action_dim)

    # One-time padding / bf16 cast / rescale precompute (outside the hot path).
    padded_params, scale, shift = prepare_fcdp_params(params, env_min, env_max)

    out = fcdp_forward(x, padded_params, scale, shift, action_dim=action_dim)
    out = jax.block_until_ready(out)

    ref = _reference_forward(x, params, env_min, env_max)
    assert out.shape == (batch, action_dim)
    assert bool(jnp.all(jnp.isfinite(out)))
    # bf16 weights/activations (per the perf review) loosen the tolerance from
    # 1e-5: ~4 layers of bf16 rounding, rescaled by up to (env_max-env_min)/2 = 3.
    assert jnp.allclose(out, ref, atol=1e-1, rtol=5e-2), (
        float(jnp.max(jnp.abs(out - ref))))

    print("KERNEL_OK")
</pallas_src>

<mosaic_0001>
module attributes {stable_mosaic.version = 11 : i64} {
  func.func @_fcdp_kernel(%arg0: i32, %arg1: memref<8x32xf32, #tpu.memory_space<vmem>>, %arg2: memref<32x128xbf16, #tpu.memory_space<vmem>>, %arg3: memref<1x128xbf16, #tpu.memory_space<vmem>>, %arg4: memref<128x128xbf16, #tpu.memory_space<vmem>>, %arg5: memref<1x128xbf16, #tpu.memory_space<vmem>>, %arg6: memref<128x256xbf16, #tpu.memory_space<vmem>>, %arg7: memref<1x256xbf16, #tpu.memory_space<vmem>>, %arg8: memref<256x128xbf16, #tpu.memory_space<vmem>>, %arg9: memref<1x128xbf16, #tpu.memory_space<vmem>>, %arg10: memref<1x128xf32, #tpu.memory_space<vmem>>, %arg11: memref<1x128xf32, #tpu.memory_space<vmem>>, %arg12: memref<8x128xf32, #tpu.memory_space<vmem>>) attributes {dimension_semantics = [#tpu.dimension_semantics<parallel>], iteration_bounds = array<i64: 1>, scalar_prefetch = 0 : i64, scratch_operands = 0 : i64, tpu.core_type = #tpu.core_type<tc>, window_params = [{transform_indices = @transform_0, window_bounds = array<i64: 8, 32>}, {pipeline_mode = #tpu.pipeline_mode<synchronous>, transform_indices = @transform_1, window_bounds = array<i64: 32, 128>}, {pipeline_mode = #tpu.pipeline_mode<synchronous>, transform_indices = @transform_2, window_bounds = array<i64: 1, 128>}, {pipeline_mode = #tpu.pipeline_mode<synchronous>, transform_indices = @transform_3, window_bounds = array<i64: 128, 128>}, {pipeline_mode = #tpu.pipeline_mode<synchronous>, transform_indices = @transform_4, window_bounds = array<i64: 1, 128>}, {pipeline_mode = #tpu.pipeline_mode<synchronous>, transform_indices = @transform_5, window_bounds = array<i64: 128, 256>}, {pipeline_mode = #tpu.pipeline_mode<synchronous>, transform_indices = @transform_6, window_bounds = array<i64: 1, 256>}, {pipeline_mode = #tpu.pipeline_mode<synchronous>, transform_indices = @transform_7, window_bounds = array<i64: 256, 128>}, {pipeline_mode = #tpu.pipeline_mode<synchronous>, transform_indices = @transform_8, window_bounds = array<i64: 1, 128>}, {pipeline_mode = #tpu.pipeline_mode<synchronous>, transform_indices = @transform_9, window_bounds = array<i64: 1, 128>}, {pipeline_mode = #tpu.pipeline_mode<synchronous>, transform_indices = @transform_10, window_bounds = array<i64: 1, 128>}, {transform_indices = @transform_11, window_bounds = array<i64: 8, 128>}]} {
    %c0 = arith.constant 0 : index
    %c0_0 = arith.constant 0 : index
    %0 = vector.load %arg1[%c0, %c0_0] : memref<8x32xf32, #tpu.memory_space<vmem>>, vector<8x32xf32>
    %1 = arith.truncf %0 : vector<8x32xf32> to vector<8x32xbf16>
    %c0_1 = arith.constant 0 : index
    %c0_2 = arith.constant 0 : index
    %2 = vector.load %arg2[%c0_1, %c0_2] : memref<32x128xbf16, #tpu.memory_space<vmem>>, vector<32x128xbf16>
    %cst = arith.constant dense<0.000000e+00> : vector<8x128xf32>
    %3 = tpu.matmul %1, %2, %cst {dimension_numbers = #tpu.dot_dimension_numbers<[1], [0], [0], [1], [0, 0, 1, 1], [], []>} : vector<8x32xbf16>, vector<32x128xbf16>, vector<8x128xf32> -> vector<8x128xf32>
    %c0_3 = arith.constant 0 : index
    %c0_4 = arith.constant 0 : index
    %4 = vector.load %arg3[%c0_3, %c0_4] : memref<1x128xbf16, #tpu.memory_space<vmem>>, vector<1x128xbf16>
    %5 = arith.extf %4 : vector<1x128xbf16> to vector<1x128xf32>
    %6 = vector.broadcast %5 : vector<1x128xf32> to vector<8x128xf32>
    %7 = arith.addf %3, %6 : vector<8x128xf32>
    %8 = math.tanh %7 : vector<8x128xf32>
    %9 = arith.truncf %8 : vector<8x128xf32> to vector<8x128xbf16>
    %c0_5 = arith.constant 0 : index
    %c0_6 = arith.constant 0 : index
    %10 = vector.load %arg4[%c0_5, %c0_6] : memref<128x128xbf16, #tpu.memory_space<vmem>>, vector<128x128xbf16>
    %cst_7 = arith.constant dense<0.000000e+00> : vector<8x128xf32>
    %11 = tpu.matmul %9, %10, %cst_7 {dimension_numbers = #tpu.dot_dimension_numbers<[1], [0], [0], [1], [0, 0, 1, 1], [], []>} : vector<8x128xbf16>, vector<128x128xbf16>, vector<8x128xf32> -> vector<8x128xf32>
    %c0_8 = arith.constant 0 : index
    %c0_9 = arith.constant 0 : index
    %12 = vector.load %arg5[%c0_8, %c0_9] : memref<1x128xbf16, #tpu.memory_space<vmem>>, vector<1x128xbf16>
    %13 = arith.extf %12 : vector<1x128xbf16> to vector<1x128xf32>
    %14 = vector.broadcast %13 : vector<1x128xf32> to vector<8x128xf32>
    %15 = arith.addf %11, %14 : vector<8x128xf32>
    %16 = math.tanh %15 : vector<8x128xf32>
    %17 = arith.truncf %16 : vector<8x128xf32> to vector<8x128xbf16>
    %c0_10 = arith.constant 0 : index
    %c0_11 = arith.constant 0 : index
    %18 = vector.load %arg6[%c0_10, %c0_11] : memref<128x256xbf16, #tpu.memory_space<vmem>>, vector<128x256xbf16>
    %cst_12 = arith.constant dense<0.000000e+00> : vector<8x256xf32>
    %19 = tpu.matmul %17, %18, %cst_12 {dimension_numbers = #tpu.dot_dimension_numbers<[1], [0], [0], [1], [0, 0, 1, 1], [], []>} : vector<8x128xbf16>, vector<128x256xbf16>, vector<8x256xf32> -> vector<8x256xf32>
    %c0_13 = arith.constant 0 : index
    %c0_14 = arith.constant 0 : index
    %20 = vector.load %arg7[%c0_13, %c0_14] : memref<1x256xbf16, #tpu.memory_space<vmem>>, vector<1x256xbf16>
    %21 = arith.extf %20 : vector<1x256xbf16> to vector<1x256xf32>
    %22 = vector.broadcast %21 : vector<1x256xf32> to vector<8x256xf32>
    %23 = arith.addf %19, %22 : vector<8x256xf32>
    %24 = math.tanh %23 : vector<8x256xf32>
    %25 = arith.truncf %24 : vector<8x256xf32> to vector<8x256xbf16>
    %c0_15 = arith.constant 0 : index
    %c0_16 = arith.constant 0 : index
    %26 = vector.load %arg8[%c0_15, %c0_16] : memref<256x128xbf16, #tpu.memory_space<vmem>>, vector<256x128xbf16>
    %cst_17 = arith.constant dense<0.000000e+00> : vector<8x128xf32>
    %27 = tpu.matmul %25, %26, %cst_17 {dimension_numbers = #tpu.dot_dimension_numbers<[1], [0], [0], [1], [0, 0, 1, 1], [], []>} : vector<8x256xbf16>, vector<256x128xbf16>, vector<8x128xf32> -> vector<8x128xf32>
    %c0_18 = arith.constant 0 : index
    %c0_19 = arith.constant 0 : index
    %28 = vector.load %arg9[%c0_18, %c0_19] : memref<1x128xbf16, #tpu.memory_space<vmem>>, vector<1x128xbf16>
    %29 = arith.extf %28 : vector<1x128xbf16> to vector<1x128xf32>
    %30 = vector.broadcast %29 : vector<1x128xf32> to vector<8x128xf32>
    %31 = arith.addf %27, %30 : vector<8x128xf32>
    %32 = math.tanh %31 : vector<8x128xf32>
    %c0_20 = arith.constant 0 : index
    %c0_21 = arith.constant 0 : index
    %33 = vector.load %arg10[%c0_20, %c0_21] : memref<1x128xf32, #tpu.memory_space<vmem>>, vector<1x128xf32>
    %34 = vector.broadcast %33 : vector<1x128xf32> to vector<8x128xf32>
    %35 = arith.mulf %32, %34 : vector<8x128xf32>
    %c0_22 = arith.constant 0 : index
    %c0_23 = arith.constant 0 : index
    %36 = vector.load %arg11[%c0_22, %c0_23] : memref<1x128xf32, #tpu.memory_space<vmem>>, vector<1x128xf32>
    %37 = vector.broadcast %36 : vector<1x128xf32> to vector<8x128xf32>
    %38 = arith.addf %35, %37 : vector<8x128xf32>
    %c0_24 = arith.constant 0 : index
    %c0_25 = arith.constant 0 : index
    %39 = vector.load %arg12[%c0_24, %c0_25] : memref<8x128xf32, #tpu.memory_space<vmem>>, vector<8x128xf32>
    tpu.vector_store %arg12[%c0_24, %c0_25], %38 {strides = array<i32>} : memref<8x128xf32, #tpu.memory_space<vmem>>, vector<8x128xf32>,
    return
  }
  func.func @transform_0(%arg0: i32) -> (i32, i32) {
    %c0_i32 = arith.constant 0 : i32
    %c0_i32_0 = arith.constant 0 : i32
    return %arg0, %c0_i32 : i32, i32
  }
  func.func @transform_1(%arg0: i32) -> (i32, i32) {
    %c0_i32 = arith.constant 0 : i32
    %c0_i32_0 = arith.constant 0 : i32
    %c0_i32_1 = arith.constant 0 : i32
    return %c0_i32, %c0_i32_0 : i32, i32
  }
  func.func @transform_2(%arg0: i32) -> (i32, i32) {
    %c0_i32 = arith.constant 0 : i32
    %c0_i32_0 = arith.constant 0 : i32
    %c0_i32_1 = arith.constant 0 : i32
    return %c0_i32, %c0_i32_0 : i32, i32
  }
  func.func @transform_3(%arg0: i32) -> (i32, i32) {
    %c0_i32 = arith.constant 0 : i32
    %c0_i32_0 = arith.constant 0 : i32
    %c0_i32_1 = arith.constant 0 : i32
    return %c0_i32, %c0_i32_0 : i32, i32
  }
  func.func @transform_4(%arg0: i32) -> (i32, i32) {
    %c0_i32 = arith.constant 0 : i32
    %c0_i32_0 = arith.constant 0 : i32
    %c0_i32_1 = arith.constant 0 : i32
    return %c0_i32, %c0_i32_0 : i32, i32
  }
  func.func @transform_5(%arg0: i32) -> (i32, i32) {
    %c0_i32 = arith.constant 0 : i32
    %c0_i32_0 = arith.constant 0 : i32
    %c0_i32_1 = arith.constant 0 : i32
    return %c0_i32, %c0_i32_0 : i32, i32
  }
  func.func @transform_6(%arg0: i32) -> (i32, i32) {
    %c0_i32 = arith.constant 0 : i32
    %c0_i32_0 = arith.constant 0 : i32
    %c0_i32_1 = arith.constant 0 : i32
    return %c0_i32, %c0_i32_0 : i32, i32
  }
  func.func @transform_7(%arg0: i32) -> (i32, i32) {
    %c0_i32 = arith.constant 0 : i32
    %c0_i32_0 = arith.constant 0 : i32
    %c0_i32_1 = arith.constant 0 : i32
    return %c0_i32, %c0_i32_0 : i32, i32
  }
  func.func @transform_8(%arg0: i32) -> (i32, i32) {
    %c0_i32 = arith.constant 0 : i32
    %c0_i32_0 = arith.constant 0 : i32
    %c0_i32_1 = arith.constant 0 : i32
    return %c0_i32, %c0_i32_0 : i32, i32
  }
  func.func @transform_9(%arg0: i32) -> (i32, i32) {
    %c0_i32 = arith.constant 0 : i32
    %c0_i32_0 = arith.constant 0 : i32
    %c0_i32_1 = arith.constant 0 : i32
    return %c0_i32, %c0_i32_0 : i32, i32
  }
  func.func @transform_10(%arg0: i32) -> (i32, i32) {
    %c0_i32 = arith.constant 0 : i32
    %c0_i32_0 = arith.constant 0 : i32
    %c0_i32_1 = arith.constant 0 : i32
    return %c0_i32, %c0_i32_0 : i32, i32
  }
  func.func @transform_11(%arg0: i32) -> (i32, i32) {
    %c0_i32 = arith.constant 0 : i32
    %c0_i32_0 = arith.constant 0 : i32
    return %arg0, %c0_i32 : i32, i32
  }
}

</mosaic_0001>

<llo_original>
// kernel: fcdp_forward.1
$region0: #{fcdp_forward.1}
  #allocation0 [shape = 'u32[]', space=smem, size = 0x4, offset = 0x4, fixed_abs, tag = 'smem constant byte address 0x4 - core index']
  #allocation1 [shape = 'u32[72,128]{1,0:T(1,128)}', space=vmem, size = 0x9000, scoped, tag = 'internal scratch']
  %s0 = inlined_call_operand.hbm [shape: f32[8,32], index: 0, kind: input, shape index: {}]
  %s1 = inlined_call_operand.hbm [shape: bf16[32,128], index: 1, kind: input, shape index: {}]
  %s2 = inlined_call_operand.vmem [shape: bf16[1,128], index: 2, kind: input, shape index: {}]
  %s3 = inlined_call_operand.hbm [shape: bf16[128,128], index: 3, kind: input, shape index: {}]
  %s4 = inlined_call_operand.hbm [shape: bf16[1,128], index: 4, kind: input, shape index: {}]
  %s5 = inlined_call_operand.hbm [shape: bf16[128,256], index: 5, kind: input, shape index: {}]
  %s6 = inlined_call_operand.vmem [shape: bf16[1,256], index: 6, kind: input, shape index: {}]
  %s7 = inlined_call_operand.hbm [shape: bf16[256,128], index: 7, kind: input, shape index: {}]
  %s8 = inlined_call_operand.vmem [shape: bf16[1,128], index: 8, kind: input, shape index: {}]
  %s9 = inlined_call_operand.vmem [shape: f32[1,128], index: 9, kind: input, shape index: {}]
  %s10 = inlined_call_operand.vmem [shape: f32[1,128], index: 10, kind: input, shape index: {}]
  %s11 = inlined_call_operand.vmem [shape: f32[8,128], index: 11, kind: output, shape index: {}]
  %s12 = sld [smem:[#allocation0]]
  $region78: #{fcdp_forward.1} parent=0
    _
  %s14 = ssub.s32 1, %s12
  %s15 = scalar_select 0, %s14, %s12
  $region1: #{fcdp_forward.1} parent=0
    #allocation2 [shape = 'u8[4096]{0}', space=vmem, size = 0x1000, scoped, tag = 'input window, operand 0, single buffered']
    #allocation3 [shape = 's32[1]{0}', space=sflag, size = 0x4, scoped, tag = 'scoped memory for fcdp_forward.1']
    #allocation4 [shape = 'u8[8192]{0}', space=vmem, size = 0x2000, scoped, tag = 'input window, operand 1, single buffered']
    #allocation5 [shape = 's32[1]{0}', space=sflag, size = 0x4, scoped, tag = 'scoped memory for fcdp_forward.1']
    #allocation6 [shape = 'u8[32768]{0}', space=vmem, size = 0x8000, scoped, tag = 'input window, operand 3, single buffered']
    #allocation7 [shape = 'u8[512]{0}', space=vmem, size = 0x400, scoped, tag = 'input window, operand 4, single buffered']
    #allocation8 [shape = 's32[1]{0}', space=sflag, size = 0x4, scoped, tag = 'scoped memory for fcdp_forward.1']
    #allocation9 [shape = 'u8[65536]{0}', space=vmem, size = 0x10000, scoped, tag = 'input window, operand 5, single buffered']
    #allocation10 [shape = 'u8[65536]{0}', space=vmem, size = 0x10000, scoped, tag = 'input window, operand 7, single buffered']
    #allocation11 [shape = 's32[1]{0}', space=sflag, size = 0x4, scoped, tag = 'scoped memory for fcdp_forward.1']
    %16 = vsyncpa [#allocation3], 0
    %17 = vsyncpa [#allocation5], 0
    %18 = vsyncpa [#allocation8], 0
    %19 = vsyncpa [#allocation11], 0
    // Predicated region
    $region2: #{fcdp_forward.1} parent=1 // pred_check
      _
    $region3: #{fcdp_forward.1} parent=1 // pred_check_branch
      %21 = sbr.rel (0) target = $region5
    $region4: #{fcdp_forward.1} parent=1 // pred_region
      %23 = vsyncadd [#allocation3], 0
      %s25 = sshll.u32 %s0, 4
      %s26 = int_to_ptr.hbm [resolvable:$true] %s25
      %s27 = sshll.u32 [#allocation2], 4
      %s28 = int_to_ptr.vmem [resolvable:$true] %s27
      %30 = dma.hbm_to_vmem [thread:$0]  %s26, 128, %s28, [#allocation3]
    $region5: #{fcdp_forward.1} parent=1 // pred_fallthru
      _
    // Predicated region
    $region6: #{fcdp_forward.1} parent=1 // pred_check
      _
    $region7: #{fcdp_forward.1} parent=1 // pred_check_branch
      %32 = sbr.rel (0) target = $region9
    $region8: #{fcdp_forward.1} parent=1 // pred_region
      %34 = vsyncadd [#allocation5], 0
      %s35 = sshll.u32 %s1, 4
      %s36 = int_to_ptr.hbm [resolvable:$true] %s35
      %s37 = sshll.u32 [#allocation4], 4
      %s38 = int_to_ptr.vmem [resolvable:$true] %s37
      %43 = dma.hbm_to_vmem [thread:$0]  %s36, 256, %s38, [#allocation5], 64, 64, 4
    $region9: #{fcdp_forward.1} parent=1 // pred_fallthru
      _
    // Predicated region
    $region10: #{fcdp_forward.1} parent=1 // pred_check
      _
    $region11: #{fcdp_forward.1} parent=1 // pred_check_branch
      %45 = sbr.rel (0) target = $region13
    $region12: #{fcdp_forward.1} parent=1 // pred_region
      _
    $region13: #{fcdp_forward.1} parent=1 // pred_fallthru
      _
    // Predicated region
    $region14: #{fcdp_forward.1} parent=1 // pred_check
      _
    $region15: #{fcdp_forward.1} parent=1 // pred_check_branch
      %47 = sbr.rel (0) target = $region17
    $region16: #{fcdp_forward.1} parent=1 // pred_region
      %49 = vsyncadd [#allocation5], 0
      %s50 = sshll.u32 %s3, 4
      %s51 = int_to_ptr.hbm [resolvable:$true] %s50
      %s52 = sshll.u32 [#allocation6], 4
      %s53 = int_to_ptr.vmem [resolvable:$true] %s52
      %58 = dma.hbm_to_vmem [thread:$0]  %s51, 1024, %s53, [#allocation5], 64, 64, 4
    $region17: #{fcdp_forward.1} parent=1 // pred_fallthru
      _
    // Predicated region
    $region18: #{fcdp_forward.1} parent=1 // pred_check
      _
    $region19: #{fcdp_forward.1} parent=1 // pred_check_branch
      %60 = sbr.rel (0) target = $region21
    $region20: #{fcdp_forward.1} parent=1 // pred_region
      %62 = vsyncadd [#allocation8], 0
      %s64 = sshll.u32 %s4, 4
      %s65 = int_to_ptr.hbm [resolvable:$true] %s64
      %s66 = sshll.u32 [#allocation7], 4
      %s67 = int_to_ptr.vmem [resolvable:$true] %s66
      %69 = dma.hbm_to_vmem [thread:$0]  %s65, 16, %s67, [#allocation8]
    $region21: #{fcdp_forward.1} parent=1 // pred_fallthru
      _
    // Predicated region
    $region22: #{fcdp_forward.1} parent=1 // pred_check
      _
    $region23: #{fcdp_forward.1} parent=1 // pred_check_branch
      %71 = sbr.rel (0) target = $region25
    $region24: #{fcdp_forward.1} parent=1 // pred_region
      %73 = vsyncadd [#allocation8], 0
      %s74 = sshll.u32 %s5, 4
      %s75 = int_to_ptr.hbm [resolvable:$true] %s74
      %s76 = sshll.u32 [#allocation9], 4
      %s77 = int_to_ptr.vmem [resolvable:$true] %s76
      %82 = dma.hbm_to_vmem [thread:$0]  %s75, 2048, %s77, [#allocation8], 128, 128, 8
    $region25: #{fcdp_forward.1} parent=1 // pred_fallthru
      _
    // Predicated region
    $region26: #{fcdp_forward.1} parent=1 // pred_check
      _
    $region27: #{fcdp_forward.1} parent=1 // pred_check_branch
      %84 = sbr.rel (0) target = $region29
    $region28: #{fcdp_forward.1} parent=1 // pred_region
      _
    $region29: #{fcdp_forward.1} parent=1 // pred_fallthru
      _
    // Predicated region
    $region30: #{fcdp_forward.1} parent=1 // pred_check
      _
    $region31: #{fcdp_forward.1} parent=1 // pred_check_branch
      %86 = sbr.rel (0) target = $region33
    $region32: #{fcdp_forward.1} parent=1 // pred_region
      %88 = vsyncadd [#allocation11], 0
      %s89 = sshll.u32 %s7, 4
      %s90 = int_to_ptr.hbm [resolvable:$true] %s89
      %s91 = sshll.u32 [#allocation10], 4
      %s92 = int_to_ptr.vmem [resolvable:$true] %s91
      %97 = dma.hbm_to_vmem [thread:$0]  %s90, 2048, %s92, [#allocation11], 64, 64, 4
    $region33: #{fcdp_forward.1} parent=1 // pred_fallthru
      _
    // Predicated region
    $region34: #{fcdp_forward.1} parent=1 // pred_check
      _
    $region35: #{fcdp_forward.1} parent=1 // pred_check_branch
      %99 = sbr.rel (0) target = $region37
    $region36: #{fcdp_forward.1} parent=1 // pred_region
      _
    $region37: #{fcdp_forward.1} parent=1 // pred_fallthru
      _
    // Predicated region
    $region38: #{fcdp_forward.1} parent=1 // pred_check
      _
    $region39: #{fcdp_forward.1} parent=1 // pred_check_branch
      %101 = sbr.rel (0) target = $region41
    $region40: #{fcdp_forward.1} parent=1 // pred_region
      _
    $region41: #{fcdp_forward.1} parent=1 // pred_fallthru
      _
    // Predicated region
    $region42: #{fcdp_forward.1} parent=1 // pred_check
      _
    $region43: #{fcdp_forward.1} parent=1 // pred_check_branch
      %103 = sbr.rel (0) target = $region45
    $region44: #{fcdp_forward.1} parent=1 // pred_region
      _
    $region45: #{fcdp_forward.1} parent=1 // pred_fallthru
      _
    // Predicated region
    $region46: #{fcdp_forward.1} parent=1 // pred_check
      _
    $region47: #{fcdp_forward.1} parent=1 // pred_check_branch
      %105 = sbr.rel (0) target = $region49
    $region48: #{fcdp_forward.1} parent=1 // pred_region
      %107 = dma.done [#allocation3], 128
    $region49: #{fcdp_forward.1} parent=1 // pred_fallthru
      _
    // Predicated region
    $region50: #{fcdp_forward.1} parent=1 // pred_check
      _
    $region51: #{fcdp_forward.1} parent=1 // pred_check_branch
      %109 = sbr.rel (0) target = $region53
    $region52: #{fcdp_forward.1} parent=1 // pred_region
      %111 = dma.done [#allocation5], 256
    $region53: #{fcdp_forward.1} parent=1 // pred_fallthru
      _
    // Predicated region
    $region54: #{fcdp_forward.1} parent=1 // pred_check
      _
    $region55: #{fcdp_forward.1} parent=1 // pred_check_branch
      %113 = sbr.rel (0) target = $region57
    $region56: #{fcdp_forward.1} parent=1 // pred_region
      %115 = dma.done [#allocation5], 1024
    $region57: #{fcdp_forward.1} parent=1 // pred_fallthru
      _
    // Predicated region
    $region58: #{fcdp_forward.1} parent=1 // pred_check
      _
    $region59: #{fcdp_forward.1} parent=1 // pred_check_branch
      %117 = sbr.rel (0) target = $region61
    $region60: #{fcdp_forward.1} parent=1 // pred_region
      %119 = dma.done [#allocation8], 16
    $region61: #{fcdp_forward.1} parent=1 // pred_fallthru
      _
    // Predicated region
    $region62: #{fcdp_forward.1} parent=1 // pred_check
      _
    $region63: #{fcdp_forward.1} parent=1 // pred_check_branch
      %121 = sbr.rel (0) target = $region65
    $region64: #{fcdp_forward.1} parent=1 // pred_region
      %123 = dma.done [#allocation8], 2048
    $region65: #{fcdp_forward.1} parent=1 // pred_fallthru
      _
    // Predicated region
    $region66: #{fcdp_forward.1} parent=1 // pred_check
      _
    $region67: #{fcdp_forward.1} parent=1 // pred_check_branch
      %125 = sbr.rel (0) target = $region69
    $region68: #{fcdp_forward.1} parent=1 // pred_region
      %127 = dma.done [#allocation11], 2048
    $region69: #{fcdp_forward.1} parent=1 // pred_fallthru
      _
    %v129 = vld [vmem:[#allocation2] sm:$0xff]
    %v130 = vpack.c.bf16 %v129, %v129
    %v131 = vld [vmem:[#allocation4] sm:$0xf]
    %v132 = vld [vmem:[#allocation4 + $0x4] sm:$0xf]
    %v133 = vld [vmem:[#allocation4 + $0x8] sm:$0xf]
    %v134 = vld [vmem:[#allocation4 + $0xc] sm:$0xf]
    %v135 = vld [vmem:[%s2] sm:$0x1]
    %v136 = vunpack.c.l.bf16 %v135
    %v137 = vperm.slane %v136, 0
    %v142 = vunpack.c.l.b16 %v131
    %v143 = vunpack.c.l.b16 %v132
    %v144 = vunpack.c.l.b16 %v133
    %v145 = vunpack.c.l.b16 %v134
    %v146 = vpack.c.b16 %v143, %v142
    %v147 = vpack.c.b16 %v145, %v144
    %vm150 = vcmask 261120
    %v152 = vsel %vm150, %v130, 0
    %154 = vmatpush.bf16.msra.mxu0 0
    %155 = vmatpush.bf16.msra.mxu0 0
    %156 = vmatpush.bf16.msra.mxu0 0
    %157 = vmatpush.bf16.msra.mxu0 0
    %158 = vmatpush.bf16.msra.mxu0 0
    %159 = vmatpush.bf16.msra.mxu0 0
    %160 = vmatpush.bf16.msra.mxu0 %v147
    %161 = vmatpush.bf16.msra.mxu0 %v146
    %162 = vmatmul.bf16.gmra.mxu0 %v152
    %v163 = vpop.f32.mrf.mxu0
    %v164 = vadd.f32 %v137, %v163
    %v165 = vpop.f32.mrf.mxu0
    %166 = vdwg.mxu0
    %v167 = vtanh.pop %v164
    %v168 = vpack.c.bf16 %v167, %v167
    %v169 = vld [vmem:[#allocation6] sm:$0xf]
    %v170 = vld [vmem:[#allocation6 + $0x4] sm:$0xf]
    %v171 = vld [vmem:[#allocation6 + $0x8] sm:$0xf]
    %v172 = vld [vmem:[#allocation6 + $0xc] sm:$0xf]
    %v173 = vld [vmem:[#allocation6 + $0x10] sm:$0xf]
    %v174 = vld [vmem:[#allocation6 + $0x14] sm:$0xf]
    %v175 = vld [vmem:[#allocation6 + $0x18] sm:$0xf]
    %v176 = vld [vmem:[#allocation6 + $0x1c] sm:$0xf]
    %v177 = vld [vmem:[#allocation6 + $0x20] sm:$0xf]
    %v178 = vld [vmem:[#allocation6 + $0x24] sm:$0xf]
    %v179 = vld [vmem:[#allocation6 + $0x28] sm:$0xf]
    %v180 = vld [vmem:[#allocation6 + $0x2c] sm:$0xf]
    %v181 = vld [vmem:[#allocation6 + $0x30] sm:$0xf]
    %v182 = vld [vmem:[#allocation6 + $0x34] sm:$0xf]
    %v183 = vld [vmem:[#allocation6 + $0x38] sm:$0xf]
    %v184 = vld [vmem:[#allocation6 + $0x3c] sm:$0xf]
    %v185 = vld [vmem:[#allocation7] sm:$0x1]
    %v186 = vunpack.c.l.bf16 %v185
    %v187 = vperm.slane %v186, 0
    %v204 = vunpack.c.l.b16 %v169
    %v205 = vunpack.c.l.b16 %v170
    %v206 = vunpack.c.l.b16 %v171
    %v207 = vunpack.c.l.b16 %v172
    %v208 = vunpack.c.l.b16 %v173
    %v209 = vunpack.c.l.b16 %v174
    %v210 = vunpack.c.l.b16 %v175
    %v211 = vunpack.c.l.b16 %v176
    %v212 = vunpack.c.l.b16 %v177
    %v213 = vunpack.c.l.b16 %v178
    %v214 = vunpack.c.l.b16 %v179
    %v215 = vunpack.c.l.b16 %v180
    %v216 = vunpack.c.l.b16 %v181
    %v217 = vunpack.c.l.b16 %v182
    %v218 = vunpack.c.l.b16 %v183
    %v219 = vunpack.c.l.b16 %v184
    %v220 = vpack.c.b16 %v205, %v204
    %v221 = vpack.c.b16 %v207, %v206
    %v222 = vpack.c.b16 %v209, %v208
    %v223 = vpack.c.b16 %v211, %v210
    %v224 = vpack.c.b16 %v213, %v212
    %v225 = vpack.c.b16 %v215, %v214
    %v226 = vpack.c.b16 %v217, %v216
    %v227 = vpack.c.b16 %v219, %v218
    %236 = vmatpush.bf16.msra.mxu0 %v227
    %237 = vmatpush.bf16.msra.mxu0 %v226
    %238 = vmatpush.bf16.msra.mxu0 %v225
    %239 = vmatpush.bf16.msra.mxu0 %v224
    %240 = vmatpush.bf16.msra.mxu0 %v223
    %241 = vmatpush.bf16.msra.mxu0 %v222
    %242 = vmatpush.bf16.msra.mxu0 %v221
    %243 = vmatpush.bf16.msra.mxu0 %v220
    %244 = vmatmul.bf16.gmra.mxu0 %v168
    %v245 = vpop.f32.mrf.mxu0
    %v246 = vadd.f32 %v187, %v245
    %v247 = vpop.f32.mrf.mxu0
    %248 = vdwg.mxu0
    %v249 = vtanh.pop %v246
    %v250 = vpack.c.bf16 %v249, %v249
    %v251 = vld [vmem:[#allocation9] sm:$0xff]
    %v252 = vld [vmem:[#allocation9 + $0x8] sm:$0xff]
    %v253 = vld [vmem:[#allocation9 + $0x10] sm:$0xff]
    %v254 = vld [vmem:[#allocation9 + $0x18] sm:$0xff]
    %v255 = vld [vmem:[#allocation9 + $0x20] sm:$0xff]
    %v256 = vld [vmem:[#allocation9 + $0x28] sm:$0xff]
    %v257 = vld [vmem:[#allocation9 + $0x30] sm:$0xff]
    %v258 = vld [vmem:[#allocation9 + $0x38] sm:$0xff]
    %v259 = vld [vmem:[#allocation9 + $0x40] sm:$0xff]
    %v260 = vld [vmem:[#allocation9 + $0x48] sm:$0xff]
    %v261 = vld [vmem:[#allocation9 + $0x50] sm:$0xff]
    %v262 = vld [vmem:[#allocation9 + $0x58] sm:$0xff]
    %v263 = vld [vmem:[#allocation9 + $0x60] sm:$0xff]
    %v264 = vld [vmem:[#allocation9 + $0x68] sm:$0xff]
    %v265 = vld [vmem:[#allocation9 + $0x70] sm:$0xff]
    %v266 = vld [vmem:[#allocation9 + $0x78] sm:$0xff]
    %v267 = vld [vmem:[%s6] sm:$0x3]
    %v268 = vunpack.c.l.bf16 %v267
    %v270 = vperm.slane %v268, 0
    %v271 = vperm.slane %v268, 2
    %v274 = vperm.slane %v270, 0
    %v275 = vperm.slane %v271, 0
    %v292 = vunpack.c.l.b16 %v251
    %v293 = vunpack.c.h.b16 %v251
    %v294 = vunpack.c.l.b16 %v252
    %v295 = vunpack.c.h.b16 %v252
    %v296 = vunpack.c.l.b16 %v253
    %v297 = vunpack.c.h.b16 %v253
    %v298 = vunpack.c.l.b16 %v254
    %v299 = vunpack.c.h.b16 %v254
    %v300 = vunpack.c.l.b16 %v255
    %v301 = vunpack.c.h.b16 %v255
    %v302 = vunpack.c.l.b16 %v256
    %v303 = vunpack.c.h.b16 %v256
    %v304 = vunpack.c.l.b16 %v257
    %v305 = vunpack.c.h.b16 %v257
    %v306 = vunpack.c.l.b16 %v258
    %v307 = vunpack.c.h.b16 %v258
    %v308 = vunpack.c.l.b16 %v259
    %v309 = vunpack.c.h.b16 %v259
    %v310 = vunpack.c.l.b16 %v260
    %v311 = vunpack.c.h.b16 %v260
    %v312 = vunpack.c.l.b16 %v261
    %v313 = vunpack.c.h.b16 %v261
    %v314 = vunpack.c.l.b16 %v262
    %v315 = vunpack.c.h.b16 %v262
    %v316 = vunpack.c.l.b16 %v263
    %v317 = vunpack.c.h.b16 %v263
    %v318 = vunpack.c.l.b16 %v264
    %v319 = vunpack.c.h.b16 %v264
    %v320 = vunpack.c.l.b16 %v265
    %v321 = vunpack.c.h.b16 %v265
    %v322 = vunpack.c.l.b16 %v266
    %v323 = vunpack.c.h.b16 %v266
    %v324 = vpack.c.b16 %v294, %v292
    %v325 = vpack.c.b16 %v295, %v293
    %v326 = vpack.c.b16 %v298, %v296
    %v327 = vpack.c.b16 %v299, %v297
    %v328 = vpack.c.b16 %v302, %v300
    %v329 = vpack.c.b16 %v303, %v301
    %v330 = vpack.c.b16 %v306, %v304
    %v331 = vpack.c.b16 %v307, %v305
    %v332 = vpack.c.b16 %v310, %v308
    %v333 = vpack.c.b16 %v311, %v309
    %v334 = vpack.c.b16 %v314, %v312
    %v335 = vpack.c.b16 %v315, %v313
    %v336 = vpack.c.b16 %v318, %v316
    %v337 = vpack.c.b16 %v319, %v317
    %v338 = vpack.c.b16 %v322, %v320
    %v339 = vpack.c.b16 %v323, %v321
    %356 = vmatpush.bf16.msra.mxu0 %v338
    %357 = vmatpush.bf16.msra.mxu0 %v336
    %358 = vmatpush.bf16.msra.mxu0 %v334
    %359 = vmatpush.bf16.msra.mxu0 %v332
    %360 = vmatpush.bf16.msra.mxu0 %v330
    %361 = vmatpush.bf16.msra.mxu0 %v328
    %362 = vmatpush.bf16.msra.mxu0 %v326
    %363 = vmatpush.bf16.msra.mxu0 %v324
    %364 = vmatmul.bf16.gmra.mxu0 %v250
    %v365 = vpop.f32.mrf.mxu0
    %v366 = vadd.f32 %v274, %v365
    %v367 = vpop.f32.mrf.mxu0
    %368 = vdwg.mxu0
    %369 = vmatpush.bf16.msra.mxu0 %v339
    %370 = vmatpush.bf16.msra.mxu0 %v337
    %371 = vmatpush.bf16.msra.mxu0 %v335
    %372 = vmatpush.bf16.msra.mxu0 %v333
    %373 = vmatpush.bf16.msra.mxu0 %v331
    %374 = vmatpush.bf16.msra.mxu0 %v329
    %375 = vmatpush.bf16.msra.mxu0 %v327
    %376 = vmatpush.bf16.msra.mxu0 %v325
    %377 = vmatmul.bf16.gmra.mxu0 %v250
    %v378 = vpop.f32.mrf.mxu0
    %v379 = vadd.f32 %v275, %v378
    %v380 = vpop.f32.mrf.mxu0
    %381 = vdwg.mxu0
    %v382 = vtanh.pop %v366
    %v383 = vtanh.pop %v379
    %v384 = vpack.c.bf16 %v382, %v382
    %v385 = vpack.c.bf16 %v383, %v383
    %v386 = vld [vmem:[#allocation10] sm:$0xf]
    %v387 = vld [vmem:[#allocation10 + $0x4] sm:$0xf]
    %v388 = vld [vmem:[#allocation10 + $0x8] sm:$0xf]
    %v389 = vld [vmem:[#allocation10 + $0xc] sm:$0xf]
    %v390 = vld [vmem:[#allocation10 + $0x10] sm:$0xf]
    %v391 = vld [vmem:[#allocation10 + $0x14] sm:$0xf]
    %v392 = vld [vmem:[#allocation10 + $0x18] sm:$0xf]
    %v393 = vld [vmem:[#allocation10 + $0x1c] sm:$0xf]
    %v394 = vld [vmem:[#allocation10 + $0x20] sm:$0xf]
    %v395 = vld [vmem:[#allocation10 + $0x24] sm:$0xf]
    %v396 = vld [vmem:[#allocation10 + $0x28] sm:$0xf]
    %v397 = vld [vmem:[#allocation10 + $0x2c] sm:$0xf]
    %v398 = vld [vmem:[#allocation10 + $0x30] sm:$0xf]
    %v399 = vld [vmem:[#allocation10 + $0x34] sm:$0xf]
    %v400 = vld [vmem:[#allocation10 + $0x38] sm:$0xf]
    %v401 = vld [vmem:[#allocation10 + $0x3c] sm:$0xf]
    %v402 = vld [vmem:[#allocation10 + $0x40] sm:$0xf]
    %v403 = vld [vmem:[#allocation10 + $0x44] sm:$0xf]
    %v404 = vld [vmem:[#allocation10 + $0x48] sm:$0xf]
    %v405 = vld [vmem:[#allocation10 + $0x4c] sm:$0xf]
    %v406 = vld [vmem:[#allocation10 + $0x50] sm:$0xf]
    %v407 = vld [vmem:[#allocation10 + $0x54] sm:$0xf]
    %v408 = vld [vmem:[#allocation10 + $0x58] sm:$0xf]
    %v409 = vld [vmem:[#allocation10 + $0x5c] sm:$0xf]
    %v410 = vld [vmem:[#allocation10 + $0x60] sm:$0xf]
    %v411 = vld [vmem:[#allocation10 + $0x64] sm:$0xf]
    %v412 = vld [vmem:[#allocation10 + $0x68] sm:$0xf]
    %v413 = vld [vmem:[#allocation10 + $0x6c] sm:$0xf]
    %v414 = vld [vmem:[#allocation10 + $0x70] sm:$0xf]
    %v415 = vld [vmem:[#allocation10 + $0x74] sm:$0xf]
    %v416 = vld [vmem:[#allocation10 + $0x78] sm:$0xf]
    %v417 = vld [vmem:[#allocation10 + $0x7c] sm:$0xf]
    %v418 = vld [vmem:[%s8] sm:$0x1]
    %v419 = vunpack.c.l.bf16 %v418
    %v420 = vperm.slane %v419, 0
    %v453 = vunpack.c.l.b16 %v386
    %v454 = vunpack.c.l.b16 %v387
    %v455 = vunpack.c.l.b16 %v388
    %v456 = vunpack.c.l.b16 %v389
    %v457 = vunpack.c.l.b16 %v390
    %v458 = vunpack.c.l.b16 %v391
    %v459 = vunpack.c.l.b16 %v392
    %v460 = vunpack.c.l.b16 %v393
    %v461 = vunpack.c.l.b16 %v394
    %v462 = vunpack.c.l.b16 %v395
    %v463 = vunpack.c.l.b16 %v396
    %v464 = vunpack.c.l.b16 %v397
    %v465 = vunpack.c.l.b16 %v398
    %v466 = vunpack.c.l.b16 %v399
    %v467 = vunpack.c.l.b16 %v400
    %v468 = vunpack.c.l.b16 %v401
    %v469 = vunpack.c.l.b16 %v402
    %v470 = vunpack.c.l.b16 %v403
    %v471 = vunpack.c.l.b16 %v404
    %v472 = vunpack.c.l.b16 %v405
    %v473 = vunpack.c.l.b16 %v406
    %v474 = vunpack.c.l.b16 %v407
    %v475 = vunpack.c.l.b16 %v408
    %v476 = vunpack.c.l.b16 %v409
    %v477 = vunpack.c.l.b16 %v410
    %v478 = vunpack.c.l.b16 %v411
    %v479 = vunpack.c.l.b16 %v412
    %v480 = vunpack.c.l.b16 %v413
    %v481 = vunpack.c.l.b16 %v414
    %v482 = vunpack.c.l.b16 %v415
    %v483 = vunpack.c.l.b16 %v416
    %v484 = vunpack.c.l.b16 %v417
    %v485 = vpack.c.b16 %v454, %v453
    %v486 = vpack.c.b16 %v456, %v455
    %v487 = vpack.c.b16 %v458, %v457
    %v488 = vpack.c.b16 %v460, %v459
    %v489 = vpack.c.b16 %v462, %v461
    %v490 = vpack.c.b16 %v464, %v463
    %v491 = vpack.c.b16 %v466, %v465
    %v492 = vpack.c.b16 %v468, %v467
    %v493 = vpack.c.b16 %v470, %v469
    %v494 = vpack.c.b16 %v472, %v471
    %v495 = vpack.c.b16 %v474, %v473
    %v496 = vpack.c.b16 %v476, %v475
    %v497 = vpack.c.b16 %v478, %v477
    %v498 = vpack.c.b16 %v480, %v479
    %v499 = vpack.c.b16 %v482, %v481
    %v500 = vpack.c.b16 %v484, %v483
    %517 = vmatpush.bf16.msra.mxu0 %v492
    %518 = vmatpush.bf16.msra.mxu0 %v491
    %519 = vmatpush.bf16.msra.mxu0 %v490
    %520 = vmatpush.bf16.msra.mxu0 %v489
    %521 = vmatpush.bf16.msra.mxu0 %v488
    %522 = vmatpush.bf16.msra.mxu0 %v487
    %523 = vmatpush.bf16.msra.mxu0 %v486
    %524 = vmatpush.bf16.msra.mxu0 %v485
    %525 = vmatmul.bf16.gmra.mxu0 %v384
    %v526 = vpop.f32.mrf.mxu0
    %v527 = vadd.f32 %v420, %v526
    %v528 = vpop.f32.mrf.mxu0
    %529 = vdwg.mxu0
    %530 = vmatpush.bf16.msra.mxu0 %v500
    %531 = vmatpush.bf16.msra.mxu0 %v499
    %532 = vmatpush.bf16.msra.mxu0 %v498
    %533 = vmatpush.bf16.msra.mxu0 %v497
    %534 = vmatpush.bf16.msra.mxu0 %v496
    %535 = vmatpush.bf16.msra.mxu0 %v495
    %536 = vmatpush.bf16.msra.mxu0 %v494
    %537 = vmatpush.bf16.msra.mxu0 %v493
    %538 = vmatmul.bf16.gmra.mxu0 %v385
    %v539 = vpop.f32.mrf.mxu0
    %v540 = vadd.f32 %v527, %v539
    %v541 = vpop.f32.mrf.mxu0
    %542 = vdwg.mxu0
    %v543 = vtanh.pop %v540
    %v544 = vld [vmem:[%s9] sm:$0x1]
    %v546 = vperm.slane %v544, 0
    %v548 = vmul.f32 %v543, %v546
    %v549 = vld [vmem:[%s10] sm:$0x1]
    %v551 = vperm.slane %v549, 0
    %v553 = vadd.f32 %v548, %v551
    %554 = vst [vmem:[%s11] sm:$0xff] %v553
    // Predicated region
    $region70: #{fcdp_forward.1} parent=1 // pred_check
      _
    $region71: #{fcdp_forward.1} parent=1 // pred_check_branch
      %556 = sbr.rel (0) target = $region73
    $region72: #{fcdp_forward.1} parent=1 // pred_region
      _
    $region73: #{fcdp_forward.1} parent=1 // pred_fallthru
      _
    // Predicated region
    $region74: #{fcdp_forward.1} parent=1 // pred_check
      _
    $region75: #{fcdp_forward.1} parent=1 // pred_check_branch
      %558 = sbr.rel (0) target = $region77
    $region76: #{fcdp_forward.1} parent=1 // pred_region
      _
    $region77: #{fcdp_forward.1} parent=1 // pred_fallthru
      _
    %559 = vsyncpa [#allocation3], 1
    %560 = vsyncpa [#allocation5], 1
    %561 = vsyncpa [#allocation8], 1
    %562 = vsyncpa [#allocation11], 1

</llo_original>
